<compile_context>
chip_gen: v5e
topology: v5e:2x2
jax: 0.10.0
libtpu: 0.0.40
codegen_flags: <defaults>
</compile_context>

<pallas_src>
import jax
import jax.numpy as jnp
from jax import lax
from jax.experimental import pallas as pl
from jax.experimental.pallas import tpu as pltpu

# ---------------------------------------------------------------------------
# model hyperparameters (small, consistent with the module's forward)
# NOTE: these are baked into the masks / slicing; different runtime shapes need re-fusing.
# ---------------------------------------------------------------------------
B = 2          # batch
S = 16         # seq_len
D = 32         # embed_dim
H = 4          # num_heads
HD = D // H    # head_dim = 8
HIDDEN = 64    # mlp hidden dim
EPS = 1e-6
SCALE = HD ** -0.5
BS = B * S     # flattened tokens = 32
SLAB = H * BS  # all-head score-slab width / block-diag KV height = 128 (lane-dense)


def _rmsnorm(v, g):
    var = jnp.mean(v * v, axis=-1, keepdims=True)
    return v * lax.rsqrt(var + EPS) * g


def transformer_layer_kernel(
    x_ref,      # (BS, D)        f32  activations
    sn_ref,     # (1, D)         f32  sa_norm scale
    wqkv_ref,   # (D, 3D)        bf16 fused q/k/v projection (Q columns pre-scaled by 1/sqrt(HD))
    wo_ref,     # (D, D)         bf16 output projection
    mn_ref,     # (1, D)         f32  mlp_norm scale
    w13_ref,    # (D, 2*HIDDEN)  bf16 fused gate/up projection (lane-dense, 128 wide)
    w2_ref,     # (HIDDEN, D)    bf16 down projection
    bias_ref,   # (BS, SLAB)     f32  additive causal + batch-block mask, tiled per head
    sel_ref,    # (SLAB, D)      f32  0/1 head-selection block-diagonal mask
    o_ref,      # (BS, D)        f32
):
    x = x_ref[...]                                         # (BS, D) f32

    # ---- sa_norm (RMSNorm, f32 elementwise) ----
    h = _rmsnorm(x, sn_ref[0])

    # ---- fused QKV projection: bf16 operands, f32 accumulate ----
    qkv = jnp.dot(h.astype(jnp.bfloat16), wqkv_ref[...],
                  preferred_element_type=jnp.float32)      # (BS, 3D)
    q = qkv[:, :D]                    # 1/sqrt(HD) already baked into the weight
    k = qkv[:, D:2 * D]
    v = qkv[:, 2 * D:]

    # ---- pack all heads: block-diagonal K / V slabs (SLAB, D) ----
    sel = sel_ref[...]                                     # 0/1, sel[h*BS+j, h*HD+d] = 1
    kblk = jnp.tile(k, (H, 1)) * sel                       # row h*BS+j keeps only head-h dims of K[j]
    vblk = jnp.tile(v, (H, 1)) * sel                       # block-diag V for the P@V step

    # scores slab (BS, SLAB): column block h holds Q_h @ K_h^T; transpose folded into
    # the MXU operand layout via dot_general contracting on the last axes.
    s = lax.dot_general(q.astype(jnp.bfloat16), kblk.astype(jnp.bfloat16),
                        (((1,), (1,)), ((), ())),
                        preferred_element_type=jnp.float32)
    s = s + bias_ref[...]                                  # causal + batch-block mask (additive)

    # ---- softmax (per head-block). Subtracting the shared per-row max across all heads
    # is a valid stabilizer (any per-row constant cancels); sums/denominators stay per head.
    # NOTE: every row has a valid diagonal entry; fully-masked rows would need a guard.
    m_ = jnp.max(s, axis=-1, keepdims=True)                # (BS, 1)
    p = jnp.exp(s - m_)                                    # (BS, SLAB), f32 (EUP)
    p16 = p.astype(jnp.bfloat16)

    # unnormalized per-head output and per-head denominators, both as lane-dense matmuls
    attn_un = jnp.dot(p16, vblk.astype(jnp.bfloat16),
                      preferred_element_type=jnp.float32)  # (BS, D)
    l_slab = jnp.dot(p16, sel.astype(jnp.bfloat16),
                     preferred_element_type=jnp.float32)   # (BS, D): l_h broadcast over head dims

    # normalize AFTER P@V (fewer VPU multiplies); reciprocal goes to the EUP slot
    attn = attn_un * pl.reciprocal(l_slab, approx=True)
    attn = jnp.dot(attn.astype(jnp.bfloat16), wo_ref[...],
                   preferred_element_type=jnp.float32)     # (BS, D)

    # ---- first residual (sa_scale = Identity) ----
    h2 = attn + x

    # ---- mlp_norm + fused SwiGLU FeedForward ----
    m2 = _rmsnorm(h2, mn_ref[0])
    gu = jnp.dot(m2.astype(jnp.bfloat16), w13_ref[...],
                 preferred_element_type=jnp.float32)       # (BS, 2*HIDDEN) = (32, 128)
    gate = gu[:, :HIDDEN]
    up = gu[:, HIDDEN:]
    act = gate * jax.nn.sigmoid(gate)                      # SiLU, f32 elementwise
    mlp = jnp.dot((act * up).astype(jnp.bfloat16), w2_ref[...],
                  preferred_element_type=jnp.float32)      # (BS, D)

    # ---- second residual (mlp_scale = Identity) ----
    o_ref[...] = h2 + mlp


def fuse_params(params):
    """One-time (init-time) fusion: fused/cast weights + static mask tensors.
    Hoisted out of the per-call wrapper so fused weights are not re-materialized per step."""
    sn, wq, wk, wv, wo, mn, w1, w3, w2 = params

    # fused QKV with attention scale baked into the Q columns (exact, weight-only)
    wqkv = jnp.concatenate([wq * SCALE, wk, wv], axis=1).astype(jnp.bfloat16)   # (D, 3D)
    w13 = jnp.concatenate([w1, w3], axis=1).astype(jnp.bfloat16)                # (D, 2*HIDDEN)
    wo_b = wo.astype(jnp.bfloat16)
    w2_b = w2.astype(jnp.bfloat16)

    # causal within each batch, block-diagonal across batches; tiled per head along lanes
    row = lax.broadcasted_iota(jnp.int32, (BS, BS), 0)
    col = lax.broadcasted_iota(jnp.int32, (BS, BS), 1)
    valid = (row >= col) & ((row // S) == (col // S))
    bias32 = jnp.where(valid, 0.0, -1e30).astype(jnp.float32)                   # (BS, BS)
    bias = jnp.tile(bias32, (1, H))                                             # (BS, SLAB)

    # head-selection block-diagonal 0/1 mask: sel[h*BS + j, h*HD + d] = 1
    r = lax.broadcasted_iota(jnp.int32, (SLAB, D), 0)
    c = lax.broadcasted_iota(jnp.int32, (SLAB, D), 1)
    sel = ((r // BS) == (c // HD)).astype(jnp.float32)                          # (SLAB, D)

    return (sn, wqkv, wo_b, mn, w13, w2_b, bias, sel)


def transformer_self_attention_layer(x, fused):
    """x: [B, S, D] float32 -> [B, S, D] float32 (fused params from fuse_params)."""
    sn, wqkv, wo, mn, w13, w2, bias, sel = fused

    # Flatten batch into token rows (free reshape); the batch split is enforced in-kernel
    # via the block-diagonal attention bias, so attention matmuls span all batches at once.
    x2 = x.reshape(BS, D)

    mm_flops = (2 * BS * D * (3 * D)           # fused QKV
                + 2 * BS * D * SLAB            # score slab
                + 2 * BS * SLAB * D            # P @ Vblk
                + 2 * BS * SLAB * D            # P @ sel (denominators)
                + 2 * BS * D * D               # output proj
                + 2 * BS * D * (2 * HIDDEN)    # fused gate/up
                + 2 * BS * HIDDEN * D)         # down proj
    transcendentals = BS * SLAB + BS * HIDDEN + 2 * BS + BS * D
    bytes_accessed = (4 * (BS * D + 2 * D + BS * SLAB + SLAB * D + BS * D)      # f32 in/out
                      + 2 * (D * 3 * D + D * D + D * 2 * HIDDEN + HIDDEN * D))  # bf16 weights

    vmem_spec = pl.BlockSpec(memory_space=pltpu.MemorySpace.VMEM)

    # Single invocation, everything (~60 KiB) resident in VMEM. TODO(synk): on v7x at
    # realistic sizes, reintroduce a grid (row tiles / grid=(B,)) with "parallel"
    # dimension_semantics and (8,128)-divisible tiles to use both TensorCores.
    out = pl.pallas_call(
        transformer_layer_kernel,
        out_shape=jax.ShapeDtypeStruct((BS, D), jnp.float32),
        in_specs=[vmem_spec] * 9,
        out_specs=vmem_spec,
        cost_estimate=pl.CostEstimate(
            flops=mm_flops,
            transcendentals=transcendentals,
            bytes_accessed=bytes_accessed),
    )(x2, sn, wqkv, wo, mn, w13, w2, bias, sel)

    return out.reshape(B, S, D)


# ---------------------------------------------------------------------------
# pure-JAX reference (mirrors the PyTorch forward semantics, unfused f32 weights)
# ---------------------------------------------------------------------------
def reference_layer(x, params):
    sn, wq, wk, wv, wo, mn, w1, w3, w2 = params
    h = _rmsnorm(x, sn[0])
    q = h @ wq
    k = h @ wk
    v = h @ wv
    qh = q.reshape(B, S, H, HD).transpose(0, 2, 1, 3)
    kh = k.reshape(B, S, H, HD).transpose(0, 2, 1, 3)
    vh = v.reshape(B, S, H, HD).transpose(0, 2, 1, 3)
    scores = jnp.einsum("bhqd,bhkd->bhqk", qh, kh) * SCALE
    causal = jnp.tril(jnp.ones((S, S), bool))
    scores = jnp.where(causal[None, None], scores, -1e30)
    p = jax.nn.softmax(scores, axis=-1)
    attn = jnp.einsum("bhqk,bhkd->bhqd", p, vh).transpose(0, 2, 1, 3).reshape(B, S, D)
    attn = attn @ wo
    h2 = attn + x
    m = _rmsnorm(h2, mn[0])
    mlp = (jax.nn.silu(m @ w1) * (m @ w3)) @ w2
    return h2 + mlp


if __name__ == "__main__":
    key = jax.random.PRNGKey(0)
    keys = jax.random.split(key, 8)

    x = jax.random.normal(keys[0], (B, S, D), jnp.float32)

    init = lambda k, shape: 0.02 * jax.random.normal(k, shape, jnp.float32)
    params = (
        jnp.ones((1, D), jnp.float32),        # sa_norm scale
        init(keys[1], (D, D)),                # wq
        init(keys[2], (D, D)),                # wk
        init(keys[3], (D, D)),                # wv
        init(keys[4], (D, D)),                # wo
        jnp.ones((1, D), jnp.float32),        # mlp_norm scale
        init(keys[5], (D, HIDDEN)),           # w1 (gate)
        init(keys[6], (D, HIDDEN)),           # w3 (up)
        init(keys[7], (HIDDEN, D)),           # w2 (down)
    )

    fused = fuse_params(params)               # one-time, init-style fusion

    out = transformer_self_attention_layer(x, fused)
    out = jax.block_until_ready(out)

    ref = reference_layer(x, params)
    assert out.shape == (B, S, D)
    # Tolerance covers bf16 matmul operands (f32 accumulate) and the EUP approximate
    # reciprocal in the softmax normalization.
    assert jnp.allclose(out, ref, atol=2e-3, rtol=2e-3), "mismatch vs reference"

    # TODO(synk): optional pos_embeddings (RoPE), kv-cache paths and BlockMask/flex_attention
    # mask variants are not exercised (module defaults: pos_embeddings=None, mask=None -> causal).
    print("KERNEL_OK")
</pallas_src>

<mosaic_0001>
module attributes {stable_mosaic.version = 11 : i64} {
  func.func @transformer_layer_kernel(%arg0: memref<32x32xf32, #tpu.memory_space<vmem>>, %arg1: memref<1x32xf32, #tpu.memory_space<vmem>>, %arg2: memref<32x96xbf16, #tpu.memory_space<vmem>>, %arg3: memref<32x32xbf16, #tpu.memory_space<vmem>>, %arg4: memref<1x32xf32, #tpu.memory_space<vmem>>, %arg5: memref<32x128xbf16, #tpu.memory_space<vmem>>, %arg6: memref<64x32xbf16, #tpu.memory_space<vmem>>, %arg7: memref<32x128xf32, #tpu.memory_space<vmem>>, %arg8: memref<128x32xf32, #tpu.memory_space<vmem>>, %arg9: memref<32x32xf32, #tpu.memory_space<vmem>>) attributes {dimension_semantics = [], scalar_prefetch = 0 : i64, scratch_operands = 0 : i64, tpu.core_type = #tpu.core_type<tc>} {
    %c0 = arith.constant 0 : index
    %c0_0 = arith.constant 0 : index
    %0 = vector.load %arg0[%c0, %c0_0] : memref<32x32xf32, #tpu.memory_space<vmem>>, vector<32x32xf32>
    %c0_1 = arith.constant 0 : index
    %c0_2 = arith.constant 0 : index
    %1 = vector.load %arg1[%c0_1, %c0_2] : memref<1x32xf32, #tpu.memory_space<vmem>>, vector<1x32xf32>
    %2 = vector.shape_cast %1 : vector<1x32xf32> to vector<32xf32>
    %3 = arith.mulf %0, %0 : vector<32x32xf32>
    %cst = arith.constant dense<0.000000e+00> : vector<32xf32>
    %4 = vector.multi_reduction <add>, %3, %cst [1] : vector<32x32xf32> to vector<32xf32>
    %5 = vector.shape_cast %4 : vector<32xf32> to vector<32x1xf32>
    %cst_3 = arith.constant 3.200000e+01 : f32
    %6 = vector.broadcast %cst_3 : f32 to vector<32x1xf32>
    %7 = arith.divf %5, %6 : vector<32x1xf32>
    %cst_4 = arith.constant 9.99999997E-7 : f32
    %8 = vector.broadcast %cst_4 : f32 to vector<32x1xf32>
    %9 = arith.addf %7, %8 : vector<32x1xf32>
    %10 = math.rsqrt %9 : vector<32x1xf32>
    %11 = vector.broadcast %10 : vector<32x1xf32> to vector<32x32xf32>
    %12 = arith.mulf %0, %11 : vector<32x32xf32>
    %13 = vector.shape_cast %2 : vector<32xf32> to vector<1x32xf32>
    %14 = vector.broadcast %13 : vector<1x32xf32> to vector<32x32xf32>
    %15 = arith.mulf %12, %14 : vector<32x32xf32>
    %16 = arith.truncf %15 : vector<32x32xf32> to vector<32x32xbf16>
    %c0_5 = arith.constant 0 : index
    %c0_6 = arith.constant 0 : index
    %17 = vector.load %arg2[%c0_5, %c0_6] : memref<32x96xbf16, #tpu.memory_space<vmem>>, vector<32x96xbf16>
    %cst_7 = arith.constant dense<0.000000e+00> : vector<32x96xf32>
    %18 = tpu.matmul %16, %17, %cst_7 {dimension_numbers = #tpu.dot_dimension_numbers<[1], [0], [0], [1], [0, 0, 1, 1], [], []>} : vector<32x32xbf16>, vector<32x96xbf16>, vector<32x96xf32> -> vector<32x96xf32>
    %19 = vector.extract_strided_slice %18 {offsets = [0, 0], sizes = [32, 32], strides = [1, 1]} : vector<32x96xf32> to vector<32x32xf32>
    %20 = vector.extract_strided_slice %18 {offsets = [0, 32], sizes = [32, 32], strides = [1, 1]} : vector<32x96xf32> to vector<32x32xf32>
    %21 = vector.extract_strided_slice %18 {offsets = [0, 64], sizes = [32, 32], strides = [1, 1]} : vector<32x96xf32> to vector<32x32xf32>
    %c0_8 = arith.constant 0 : index
    %c0_9 = arith.constant 0 : index
    %22 = vector.load %arg8[%c0_8, %c0_9] : memref<128x32xf32, #tpu.memory_space<vmem>>, vector<128x32xf32>
    %23 = tpu.concatenate %20, %20, %20, %20 in 0 : vector<32x32xf32>, vector<32x32xf32>, vector<32x32xf32>, vector<32x32xf32> -> vector<128x32xf32>
    %24 = arith.mulf %23, %22 : vector<128x32xf32>
    %25 = tpu.concatenate %21, %21, %21, %21 in 0 : vector<32x32xf32>, vector<32x32xf32>, vector<32x32xf32>, vector<32x32xf32> -> vector<128x32xf32>
    %26 = arith.mulf %25, %22 : vector<128x32xf32>
    %27 = arith.truncf %19 : vector<32x32xf32> to vector<32x32xbf16>
    %28 = arith.truncf %24 : vector<128x32xf32> to vector<128x32xbf16>
    %cst_10 = arith.constant dense<0.000000e+00> : vector<32x128xf32>
    %29 = tpu.matmul %27, %28, %cst_10 {dimension_numbers = #tpu.dot_dimension_numbers<[1], [1], [0], [0], [0, 0, 1, 0], [], []>} : vector<32x32xbf16>, vector<128x32xbf16>, vector<32x128xf32> -> vector<32x128xf32>
    %c0_11 = arith.constant 0 : index
    %c0_12 = arith.constant 0 : index
    %30 = vector.load %arg7[%c0_11, %c0_12] : memref<32x128xf32, #tpu.memory_space<vmem>>, vector<32x128xf32>
    %31 = arith.addf %29, %30 : vector<32x128xf32>
    %cst_13 = arith.constant dense<0xFF800000> : vector<32xf32>
    %32 = vector.multi_reduction <maximumf>, %31, %cst_13 [1] : vector<32x128xf32> to vector<32xf32>
    %33 = vector.shape_cast %32 : vector<32xf32> to vector<32x1xf32>
    %34 = vector.broadcast %33 : vector<32x1xf32> to vector<32x128xf32>
    %35 = arith.subf %31, %34 : vector<32x128xf32>
    %36 = math.exp %35 : vector<32x128xf32>
    %37 = arith.truncf %36 : vector<32x128xf32> to vector<32x128xbf16>
    %38 = arith.truncf %26 : vector<128x32xf32> to vector<128x32xbf16>
    %cst_14 = arith.constant dense<0.000000e+00> : vector<32x32xf32>
    %39 = tpu.matmul %37, %38, %cst_14 {dimension_numbers = #tpu.dot_dimension_numbers<[1], [0], [0], [1], [0, 0, 1, 1], [], []>} : vector<32x128xbf16>, vector<128x32xbf16>, vector<32x32xf32> -> vector<32x32xf32>
    %40 = arith.truncf %22 : vector<128x32xf32> to vector<128x32xbf16>
    %cst_15 = arith.constant dense<0.000000e+00> : vector<32x32xf32>
    %41 = tpu.matmul %37, %40, %cst_15 {dimension_numbers = #tpu.dot_dimension_numbers<[1], [0], [0], [1], [0, 0, 1, 1], [], []>} : vector<32x128xbf16>, vector<128x32xbf16>, vector<32x32xf32> -> vector<32x32xf32>
    %42 = tpu.reciprocal %41 {approx = true} : vector<32x32xf32> -> vector<32x32xf32>
    %43 = arith.mulf %39, %42 : vector<32x32xf32>
    %44 = arith.truncf %43 : vector<32x32xf32> to vector<32x32xbf16>
    %c0_16 = arith.constant 0 : index
    %c0_17 = arith.constant 0 : index
    %45 = vector.load %arg3[%c0_16, %c0_17] : memref<32x32xbf16, #tpu.memory_space<vmem>>, vector<32x32xbf16>
    %cst_18 = arith.constant dense<0.000000e+00> : vector<32x32xf32>
    %46 = tpu.matmul %44, %45, %cst_18 {dimension_numbers = #tpu.dot_dimension_numbers<[1], [0], [0], [1], [0, 0, 1, 1], [], []>} : vector<32x32xbf16>, vector<32x32xbf16>, vector<32x32xf32> -> vector<32x32xf32>
    %47 = arith.addf %46, %0 : vector<32x32xf32>
    %c0_19 = arith.constant 0 : index
    %c0_20 = arith.constant 0 : index
    %48 = vector.load %arg4[%c0_19, %c0_20] : memref<1x32xf32, #tpu.memory_space<vmem>>, vector<1x32xf32>
    %49 = vector.shape_cast %48 : vector<1x32xf32> to vector<32xf32>
    %50 = arith.mulf %47, %47 : vector<32x32xf32>
    %cst_21 = arith.constant dense<0.000000e+00> : vector<32xf32>
    %51 = vector.multi_reduction <add>, %50, %cst_21 [1] : vector<32x32xf32> to vector<32xf32>
    %52 = vector.shape_cast %51 : vector<32xf32> to vector<32x1xf32>
    %cst_22 = arith.constant 3.200000e+01 : f32
    %53 = vector.broadcast %cst_22 : f32 to vector<32x1xf32>
    %54 = arith.divf %52, %53 : vector<32x1xf32>
    %cst_23 = arith.constant 9.99999997E-7 : f32
    %55 = vector.broadcast %cst_23 : f32 to vector<32x1xf32>
    %56 = arith.addf %54, %55 : vector<32x1xf32>
    %57 = math.rsqrt %56 : vector<32x1xf32>
    %58 = vector.broadcast %57 : vector<32x1xf32> to vector<32x32xf32>
    %59 = arith.mulf %47, %58 : vector<32x32xf32>
    %60 = vector.shape_cast %49 : vector<32xf32> to vector<1x32xf32>
    %61 = vector.broadcast %60 : vector<1x32xf32> to vector<32x32xf32>
    %62 = arith.mulf %59, %61 : vector<32x32xf32>
    %63 = arith.truncf %62 : vector<32x32xf32> to vector<32x32xbf16>
    %c0_24 = arith.constant 0 : index
    %c0_25 = arith.constant 0 : index
    %64 = vector.load %arg5[%c0_24, %c0_25] : memref<32x128xbf16, #tpu.memory_space<vmem>>, vector<32x128xbf16>
    %cst_26 = arith.constant dense<0.000000e+00> : vector<32x128xf32>
    %65 = tpu.matmul %63, %64, %cst_26 {dimension_numbers = #tpu.dot_dimension_numbers<[1], [0], [0], [1], [0, 0, 1, 1], [], []>} : vector<32x32xbf16>, vector<32x128xbf16>, vector<32x128xf32> -> vector<32x128xf32>
    %66 = vector.extract_strided_slice %65 {offsets = [0, 0], sizes = [32, 64], strides = [1, 1]} : vector<32x128xf32> to vector<32x64xf32>
    %67 = vector.extract_strided_slice %65 {offsets = [0, 64], sizes = [32, 64], strides = [1, 1]} : vector<32x128xf32> to vector<32x64xf32>
    %68 = arith.negf %66 : vector<32x64xf32>
    %69 = math.exp %68 : vector<32x64xf32>
    %cst_27 = arith.constant 1.000000e+00 : f32
    %70 = vector.broadcast %cst_27 : f32 to vector<32x64xf32>
    %71 = arith.addf %70, %69 : vector<32x64xf32>
    %72 = arith.divf %70, %71 : vector<32x64xf32>
    %73 = arith.mulf %66, %72 : vector<32x64xf32>
    %74 = arith.mulf %73, %67 : vector<32x64xf32>
    %75 = arith.truncf %74 : vector<32x64xf32> to vector<32x64xbf16>
    %c0_28 = arith.constant 0 : index
    %c0_29 = arith.constant 0 : index
    %76 = vector.load %arg6[%c0_28, %c0_29] : memref<64x32xbf16, #tpu.memory_space<vmem>>, vector<64x32xbf16>
    %cst_30 = arith.constant dense<0.000000e+00> : vector<32x32xf32>
    %77 = tpu.matmul %75, %76, %cst_30 {dimension_numbers = #tpu.dot_dimension_numbers<[1], [0], [0], [1], [0, 0, 1, 1], [], []>} : vector<32x64xbf16>, vector<64x32xbf16>, vector<32x32xf32> -> vector<32x32xf32>
    %78 = arith.addf %47, %77 : vector<32x32xf32>
    %c0_31 = arith.constant 0 : index
    %c0_32 = arith.constant 0 : index
    %79 = vector.load %arg9[%c0_31, %c0_32] : memref<32x32xf32, #tpu.memory_space<vmem>>, vector<32x32xf32>
    tpu.vector_store %arg9[%c0_31, %c0_32], %78 {strides = array<i32>} : memref<32x32xf32, #tpu.memory_space<vmem>>, vector<32x32xf32>,
    return
  }
}

</mosaic_0001>

<llo_original>
// kernel: tpu_custom_call.1
$region0: #{tpu_custom_call.1}
  #allocation0 [shape = 'u32[]', space=smem, size = 0x4, offset = 0x4, fixed_abs, tag = 'smem constant byte address 0x4 - core index']
  #allocation1 [shape = 'u32[72,128]{1,0:T(1,128)}', space=vmem, size = 0x9000, scoped, tag = 'internal scratch']
  %s0 = inlined_call_operand.vmem [shape: f32[32,32], index: 0, kind: input, shape index: {}]
  %s1 = inlined_call_operand.vmem [shape: f32[1,32], index: 1, kind: input, shape index: {}]
  %s2 = inlined_call_operand.vmem [shape: bf16[32,96], index: 2, kind: input, shape index: {}]
  %s3 = inlined_call_operand.vmem [shape: bf16[32,32], index: 3, kind: input, shape index: {}]
  %s4 = inlined_call_operand.vmem [shape: f32[1,32], index: 4, kind: input, shape index: {}]
  %s5 = inlined_call_operand.vmem [shape: bf16[32,128], index: 5, kind: input, shape index: {}]
  %s6 = inlined_call_operand.vmem [shape: bf16[64,32], index: 6, kind: input, shape index: {}]
  %s7 = inlined_call_operand.vmem [shape: f32[32,128], index: 7, kind: input, shape index: {}]
  %s8 = inlined_call_operand.vmem [shape: f32[128,32], index: 8, kind: input, shape index: {}]
  %s9 = inlined_call_operand.hbm [shape: f32[32,32], index: 9, kind: output, shape index: {}]
  %s10 = sld [smem:[#allocation0]]
  $region46: #{tpu_custom_call.1} parent=0
    _
  %s12 = ssub.s32 1, %s10
  %s13 = scalar_select 0, %s12, %s10
  $region1: #{tpu_custom_call.1} parent=0
    #allocation2 [shape = 'u8[16384]{0}', space=vmem, size = 0x4000, scoped, tag = 'output window, operand 0, single buffered']
    #allocation3 [shape = 's32[1]{0}', space=sflag, size = 0x4, scoped, tag = 'scoped memory for tpu_custom_call.1']
    %14 = vsyncpa [#allocation3], 0
    // Predicated region
    $region2: #{tpu_custom_call.1} parent=1 // pred_check
      _
    $region3: #{tpu_custom_call.1} parent=1 // pred_check_branch
      %16 = sbr.rel (0) target = $region5
    $region4: #{tpu_custom_call.1} parent=1 // pred_region
      _
    $region5: #{tpu_custom_call.1} parent=1 // pred_fallthru
      _
    // Predicated region
    $region6: #{tpu_custom_call.1} parent=1 // pred_check
      _
    $region7: #{tpu_custom_call.1} parent=1 // pred_check_branch
      %18 = sbr.rel (0) target = $region9
    $region8: #{tpu_custom_call.1} parent=1 // pred_region
      _
    $region9: #{tpu_custom_call.1} parent=1 // pred_fallthru
      _
    // Predicated region
    $region10: #{tpu_custom_call.1} parent=1 // pred_check
      _
    $region11: #{tpu_custom_call.1} parent=1 // pred_check_branch
      %20 = sbr.rel (0) target = $region13
    $region12: #{tpu_custom_call.1} parent=1 // pred_region
      _
    $region13: #{tpu_custom_call.1} parent=1 // pred_fallthru
      _
    // Predicated region
    $region14: #{tpu_custom_call.1} parent=1 // pred_check
      _
    $region15: #{tpu_custom_call.1} parent=1 // pred_check_branch
      %22 = sbr.rel (0) target = $region17
    $region16: #{tpu_custom_call.1} parent=1 // pred_region
      _
    $region17: #{tpu_custom_call.1} parent=1 // pred_fallthru
      _
    // Predicated region
    $region18: #{tpu_custom_call.1} parent=1 // pred_check
      _
    $region19: #{tpu_custom_call.1} parent=1 // pred_check_branch
      %24 = sbr.rel (0) target = $region21
    $region20: #{tpu_custom_call.1} parent=1 // pred_region
      _
    $region21: #{tpu_custom_call.1} parent=1 // pred_fallthru
      _
    // Predicated region
    $region22: #{tpu_custom_call.1} parent=1 // pred_check
      _
    $region23: #{tpu_custom_call.1} parent=1 // pred_check_branch
      %26 = sbr.rel (0) target = $region25
    $region24: #{tpu_custom_call.1} parent=1 // pred_region
      _
    $region25: #{tpu_custom_call.1} parent=1 // pred_fallthru
      _
    // Predicated region
    $region26: #{tpu_custom_call.1} parent=1 // pred_check
      _
    $region27: #{tpu_custom_call.1} parent=1 // pred_check_branch
      %28 = sbr.rel (0) target = $region29
    $region28: #{tpu_custom_call.1} parent=1 // pred_region
      _
    $region29: #{tpu_custom_call.1} parent=1 // pred_fallthru
      _
    // Predicated region
    $region30: #{tpu_custom_call.1} parent=1 // pred_check
      _
    $region31: #{tpu_custom_call.1} parent=1 // pred_check_branch
      %30 = sbr.rel (0) target = $region33
    $region32: #{tpu_custom_call.1} parent=1 // pred_region
      _
    $region33: #{tpu_custom_call.1} parent=1 // pred_fallthru
      _
    // Predicated region
    $region34: #{tpu_custom_call.1} parent=1 // pred_check
      _
    $region35: #{tpu_custom_call.1} parent=1 // pred_check_branch
      %32 = sbr.rel (0) target = $region37
    $region36: #{tpu_custom_call.1} parent=1 // pred_region
      _
    $region37: #{tpu_custom_call.1} parent=1 // pred_fallthru
      _
    %v34 = vld [vmem:[%s0] sm:$0xff]
    %v35 = vld [vmem:[%s0 + $0x8] sm:$0xff]
    %v36 = vld [vmem:[%s0 + $0x10] sm:$0xff]
    %v37 = vld [vmem:[%s0 + $0x18] sm:$0xff]
    %v38 = vld [vmem:[%s1] sm:$0x1]
    %v39 = vmul.f32 %v34, %v34
    %v40 = vmul.f32 %v35, %v35
    %v41 = vmul.f32 %v36, %v36
    %v42 = vmul.f32 %v37, %v37
    %vm43 = vcmask 261120
    %v44 = vsel %vm43, %v39, 0.0
    %45 = vadd.xlane.f32.xlu0 %v44
    %v46 = vpop.xlane.xlu0 %45
    %v47 = vsel %vm43, %v40, 0.0
    %48 = vadd.xlane.f32.xlu0 %v47
    %v49 = vpop.xlane.xlu0 %48
    %v50 = vsel %vm43, %v41, 0.0
    %51 = vadd.xlane.f32.xlu0 %v50
    %v52 = vpop.xlane.xlu0 %51
    %v53 = vsel %vm43, %v42, 0.0
    %54 = vadd.xlane.f32.xlu0 %v53
    %v55 = vpop.xlane.xlu0 %54
    %v56 = vrcp.pop 32.0
    %v57 = vmul.f32 32.0, %v56
    %v58 = vsub.f32 1.0, %v57
    %v59 = vmul.f32 %v56, %v58
    %v60 = vadd.f32 %v56, %v59
    %vm61 = vweird.f32 %v56
    %v62 = vsel %vm61, %v56, %v60
    %v63 = vmul.f32 %v46, %v62
    %v64 = vmul.f32 %v49, %v62
    %v65 = vmul.f32 %v52, %v62
    %v66 = vmul.f32 %v55, %v62
    %v67 = vadd.f32 %v63, 1e-06
    %v68 = vadd.f32 %v64, 1e-06
    %v69 = vadd.f32 %v65, 1e-06
    %v70 = vadd.f32 %v66, 1e-06
    %v71 = vrsqrt.pop %v67
    %v72 = vmul.f32 %v71, %v67
    %v73 = vmul.f32 %v72, %v71
    %v74 = vmul.f32 0.5, %v73
    %v75 = vsub.f32 1.5, %v74
    %v76 = vmul.f32 %v71, %v75
    %vm77 = vweird.f32 %v67
    %vm78 = vweird.f32 %v71
    %vm79 = vmor %vm77, %vm78
    %v80 = vsel %vm79, %v71, %v76
    %v81 = vrsqrt.pop %v68
    %v82 = vmul.f32 %v81, %v68
    %v83 = vmul.f32 %v82, %v81
    %v84 = vmul.f32 0.5, %v83
    %v85 = vsub.f32 1.5, %v84
    %v86 = vmul.f32 %v81, %v85
    %vm87 = vweird.f32 %v68
    %vm88 = vweird.f32 %v81
    %vm89 = vmor %vm87, %vm88
    %v90 = vsel %vm89, %v81, %v86
    %v91 = vrsqrt.pop %v69
    %v92 = vmul.f32 %v91, %v69
    %v93 = vmul.f32 %v92, %v91
    %v94 = vmul.f32 0.5, %v93
    %v95 = vsub.f32 1.5, %v94
    %v96 = vmul.f32 %v91, %v95
    %vm97 = vweird.f32 %v69
    %vm98 = vweird.f32 %v91
    %vm99 = vmor %vm97, %vm98
    %v100 = vsel %vm99, %v91, %v96
    %v101 = vrsqrt.pop %v70
    %v102 = vmul.f32 %v101, %v70
    %v103 = vmul.f32 %v102, %v101
    %v104 = vmul.f32 0.5, %v103
    %v105 = vsub.f32 1.5, %v104
    %v106 = vmul.f32 %v101, %v105
    %vm107 = vweird.f32 %v70
    %vm108 = vweird.f32 %v101
    %vm109 = vmor %vm107, %vm108
    %v110 = vsel %vm109, %v101, %v106
    %v111 = vmul.f32 %v34, %v80
    %v112 = vmul.f32 %v35, %v90
    %v113 = vmul.f32 %v36, %v100
    %v114 = vmul.f32 %v37, %v110
    %v116 = vperm.slane %v38, 0
    %v118 = vmul.f32 %v111, %v116
    %v119 = vmul.f32 %v112, %v116
    %v120 = vmul.f32 %v113, %v116
    %v121 = vmul.f32 %v114, %v116
    %v122 = vpack.c.bf16 %v119, %v118
    %v123 = vpack.c.bf16 %v121, %v120
    %v124 = vld [vmem:[%s2] sm:$0xf]
    %v125 = vld [vmem:[%s2 + $0x4] sm:$0xf]
    %v126 = vld [vmem:[%s2 + $0x8] sm:$0xf]
    %v127 = vld [vmem:[%s2 + $0xc] sm:$0xf]
    %v132 = vunpack.c.l.b16 %v124
    %v133 = vunpack.c.l.b16 %v125
    %v134 = vunpack.c.l.b16 %v126
    %v135 = vunpack.c.l.b16 %v127
    %v136 = vpack.c.b16 %v133, %v132
    %v137 = vpack.c.b16 %v135, %v134
    %v141 = vsel %vm43, %v122, 0
    %v144 = vsel %vm43, %v123, 0
    %146 = vmatpush.bf16.msra.mxu0 0
    %147 = vmatpush.bf16.msra.mxu0 0
    %148 = vmatpush.bf16.msra.mxu0 0
    %149 = vmatpush.bf16.msra.mxu0 0
    %150 = vmatpush.bf16.msra.mxu0 0
    %151 = vmatpush.bf16.msra.mxu0 0
    %152 = vmatpush.bf16.msra.mxu0 %v137
    %153 = vmatpush.bf16.msra.mxu0 %v136
    %154 = vmatmul.bf16.gmra.mxu0 %v141
    %v155 = vpop.f32.mrf.mxu0
    %v156 = vadd.f32 0.0, %v155
    %v157 = vpop.f32.mrf.mxu0
    %v158 = vadd.f32 0.0, %v157
    %159 = vmatmul.bf16.gmra.mxu0 %v144
    %v160 = vpop.f32.mrf.mxu0
    %v161 = vadd.f32 0.0, %v160
    %v162 = vpop.f32.mrf.mxu0
    %v163 = vadd.f32 0.0, %v162
    %164 = vdwg.mxu0
    %v165 = vld [vmem:[%s8] sm:$0xff]
    %v166 = vld [vmem:[%s8 + $0x8] sm:$0xff]
    %v167 = vld [vmem:[%s8 + $0x10] sm:$0xff]
    %v168 = vld [vmem:[%s8 + $0x18] sm:$0xff]
    %v169 = vld [vmem:[%s8 + $0x20] sm:$0xff]
    %v170 = vld [vmem:[%s8 + $0x28] sm:$0xff]
    %v171 = vld [vmem:[%s8 + $0x30] sm:$0xff]
    %v172 = vld [vmem:[%s8 + $0x38] sm:$0xff]
    %v173 = vld [vmem:[%s8 + $0x40] sm:$0xff]
    %v174 = vld [vmem:[%s8 + $0x48] sm:$0xff]
    %v175 = vld [vmem:[%s8 + $0x50] sm:$0xff]
    %v176 = vld [vmem:[%s8 + $0x58] sm:$0xff]
    %v177 = vld [vmem:[%s8 + $0x60] sm:$0xff]
    %v178 = vld [vmem:[%s8 + $0x68] sm:$0xff]
    %v179 = vld [vmem:[%s8 + $0x70] sm:$0xff]
    %v180 = vld [vmem:[%s8 + $0x78] sm:$0xff]
    %197 = vrot.lane.b32.xlu0 %v165, 32
    %v198 = vpop.permute.xlu0 %197
    %199 = vrot.lane.b32.xlu0 %v166, 32
    %v200 = vpop.permute.xlu0 %199
    %201 = vrot.lane.b32.xlu0 %v167, 32
    %v202 = vpop.permute.xlu0 %201
    %203 = vrot.lane.b32.xlu0 %v168, 32
    %v204 = vpop.permute.xlu0 %203
    %205 = vrot.lane.b32.xlu0 %v169, 32
    %v206 = vpop.permute.xlu0 %205
    %207 = vrot.lane.b32.xlu0 %v170, 32
    %v208 = vpop.permute.xlu0 %207
    %209 = vrot.lane.b32.xlu0 %v171, 32
    %v210 = vpop.permute.xlu0 %209
    %211 = vrot.lane.b32.xlu0 %v172, 32
    %v212 = vpop.permute.xlu0 %211
    %213 = vrot.lane.b32.xlu0 %v173, 32
    %v214 = vpop.permute.xlu0 %213
    %215 = vrot.lane.b32.xlu0 %v174, 32
    %v216 = vpop.permute.xlu0 %215
    %217 = vrot.lane.b32.xlu0 %v175, 32
    %v218 = vpop.permute.xlu0 %217
    %219 = vrot.lane.b32.xlu0 %v176, 32
    %v220 = vpop.permute.xlu0 %219
    %221 = vrot.lane.b32.xlu0 %v177, 32
    %v222 = vpop.permute.xlu0 %221
    %223 = vrot.lane.b32.xlu0 %v178, 32
    %v224 = vpop.permute.xlu0 %223
    %225 = vrot.lane.b32.xlu0 %v179, 32
    %v226 = vpop.permute.xlu0 %225
    %227 = vrot.lane.b32.xlu0 %v180, 32
    %v228 = vpop.permute.xlu0 %227
    %v245 = vmul.f32 %v156, %v198
    %v246 = vmul.f32 %v158, %v200
    %v247 = vmul.f32 %v161, %v202
    %v248 = vmul.f32 %v163, %v204
    %v249 = vmul.f32 %v156, %v206
    %v250 = vmul.f32 %v158, %v208
    %v251 = vmul.f32 %v161, %v210
    %v252 = vmul.f32 %v163, %v212
    %v253 = vmul.f32 %v156, %v214
    %v254 = vmul.f32 %v158, %v216
    %v255 = vmul.f32 %v161, %v218
    %v256 = vmul.f32 %v163, %v220
    %v257 = vmul.f32 %v156, %v222
    %v258 = vmul.f32 %v158, %v224
    %v259 = vmul.f32 %v161, %v226
    %v260 = vmul.f32 %v163, %v228
    %261 = vrot.lane.b32.xlu0 %v165, 64
    %v262 = vpop.permute.xlu0 %261
    %263 = vrot.lane.b32.xlu0 %v166, 64
    %v264 = vpop.permute.xlu0 %263
    %265 = vrot.lane.b32.xlu0 %v167, 64
    %v266 = vpop.permute.xlu0 %265
    %267 = vrot.lane.b32.xlu0 %v168, 64
    %v268 = vpop.permute.xlu0 %267
    %269 = vrot.lane.b32.xlu0 %v169, 64
    %v270 = vpop.permute.xlu0 %269
    %271 = vrot.lane.b32.xlu0 %v170, 64
    %v272 = vpop.permute.xlu0 %271
    %273 = vrot.lane.b32.xlu0 %v171, 64
    %v274 = vpop.permute.xlu0 %273
    %275 = vrot.lane.b32.xlu0 %v172, 64
    %v276 = vpop.permute.xlu0 %275
    %277 = vrot.lane.b32.xlu0 %v173, 64
    %v278 = vpop.permute.xlu0 %277
    %279 = vrot.lane.b32.xlu0 %v174, 64
    %v280 = vpop.permute.xlu0 %279
    %281 = vrot.lane.b32.xlu0 %v175, 64
    %v282 = vpop.permute.xlu0 %281
    %283 = vrot.lane.b32.xlu0 %v176, 64
    %v284 = vpop.permute.xlu0 %283
    %285 = vrot.lane.b32.xlu0 %v177, 64
    %v286 = vpop.permute.xlu0 %285
    %287 = vrot.lane.b32.xlu0 %v178, 64
    %v288 = vpop.permute.xlu0 %287
    %289 = vrot.lane.b32.xlu0 %v179, 64
    %v290 = vpop.permute.xlu0 %289
    %291 = vrot.lane.b32.xlu0 %v180, 64
    %v292 = vpop.permute.xlu0 %291
    %v309 = vmul.f32 %v156, %v262
    %v310 = vmul.f32 %v158, %v264
    %v311 = vmul.f32 %v161, %v266
    %v312 = vmul.f32 %v163, %v268
    %v313 = vmul.f32 %v156, %v270
    %v314 = vmul.f32 %v158, %v272
    %v315 = vmul.f32 %v161, %v274
    %v316 = vmul.f32 %v163, %v276
    %v317 = vmul.f32 %v156, %v278
    %v318 = vmul.f32 %v158, %v280
    %v319 = vmul.f32 %v161, %v282
    %v320 = vmul.f32 %v163, %v284
    %v321 = vmul.f32 %v156, %v286
    %v322 = vmul.f32 %v158, %v288
    %v323 = vmul.f32 %v161, %v290
    %v324 = vmul.f32 %v163, %v292
    %v325 = vpack.c.bf16 %v158, %v156
    %v326 = vpack.c.bf16 %v163, %v161
    %v327 = vpack.c.bf16 %v246, %v245
    %v328 = vpack.c.bf16 %v248, %v247
    %v329 = vpack.c.bf16 %v250, %v249
    %v330 = vpack.c.bf16 %v252, %v251
    %v331 = vpack.c.bf16 %v254, %v253
    %v332 = vpack.c.bf16 %v256, %v255
    %v333 = vpack.c.bf16 %v258, %v257
    %v334 = vpack.c.bf16 %v260, %v259
    %v335 = vld [vmem:[%s7] sm:$0xff]
    %v336 = vld [vmem:[%s7 + $0x8] sm:$0xff]
    %v337 = vld [vmem:[%s7 + $0x10] sm:$0xff]
    %v338 = vld [vmem:[%s7 + $0x18] sm:$0xff]
    %347 = vrot.lane.b32.xlu0 %v327, 96
    %v348 = vpop.permute.xlu0 %347
    %349 = vrot.lane.b32.xlu0 %v328, 96
    %v350 = vpop.permute.xlu0 %349
    %351 = vrot.lane.b32.xlu0 %v329, 96
    %v352 = vpop.permute.xlu0 %351
    %353 = vrot.lane.b32.xlu0 %v330, 96
    %v354 = vpop.permute.xlu0 %353
    %355 = vrot.lane.b32.xlu0 %v331, 96
    %v356 = vpop.permute.xlu0 %355
    %357 = vrot.lane.b32.xlu0 %v332, 96
    %v358 = vpop.permute.xlu0 %357
    %359 = vrot.lane.b32.xlu0 %v333, 96
    %v360 = vpop.permute.xlu0 %359
    %361 = vrot.lane.b32.xlu0 %v334, 96
    %v362 = vpop.permute.xlu0 %361
    %v364 = vsel %vm43, %v325, 0
    %v367 = vsel %vm43, %v326, 0
    %v370 = vsel %vm43, %v348, 0
    %v373 = vsel %vm43, %v350, 0
    %v376 = vsel %vm43, %v352, 0
    %v379 = vsel %vm43, %v354, 0
    %v382 = vsel %vm43, %v356, 0
    %v385 = vsel %vm43, %v358, 0
    %v388 = vsel %vm43, %v360, 0
    %v391 = vsel %vm43, %v362, 0
    %393 = vmatpush.bf16.xpose.msra.mxu0 %v391
    %394 = vmatpush.bf16.xpose.msra.mxu0 %v388
    %395 = vmatpush.bf16.xpose.msra.mxu0 %v385
    %396 = vmatpush.bf16.xpose.msra.mxu0 %v382
    %397 = vmatpush.bf16.xpose.msra.mxu0 %v379
    %398 = vmatpush.bf16.xpose.msra.mxu0 %v376
    %399 = vmatpush.bf16.xpose.msra.mxu0 %v373
    %400 = vmatpush.bf16.xpose.msra.mxu0 %v370
    %401 = vmatmul.bf16.gmra.mxu0 %v364
    %v402 = vpop.f32.mrf.mxu0
    %v403 = vadd.f32 %v335, %v402
    %v404 = vpop.f32.mrf.mxu0
    %v405 = vadd.f32 %v336, %v404
    %406 = vmatmul.bf16.gmra.mxu0 %v367
    %v407 = vpop.f32.mrf.mxu0
    %v408 = vadd.f32 %v337, %v407
    %v409 = vpop.f32.mrf.mxu0
    %v410 = vadd.f32 %v338, %v409
    %411 = vdwg.mxu0
    %412 = vmax.xlane.f32.xlu0 %v403
    %v413 = vpop.xlane.xlu0 %412
    %414 = vmax.xlane.f32.xlu0 %v405
    %v415 = vpop.xlane.xlu0 %414
    %416 = vmax.xlane.f32.xlu0 %v408
    %v417 = vpop.xlane.xlu0 %416
    %418 = vmax.xlane.f32.xlu0 %v410
    %v419 = vpop.xlane.xlu0 %418
    %v420 = vsub.f32 %v403, %v413
    %v421 = vsub.f32 %v405, %v415
    %v422 = vsub.f32 %v408, %v417
    %v423 = vsub.f32 %v410, %v419
    %v424 = vmul.f32 %v420, 1.442695
    %v425 = vpow.pop %v424
    %v426 = vmul.f32 %v421, 1.442695
    %v427 = vpow.pop %v426
    %v428 = vmul.f32 %v422, 1.442695
    %v429 = vpow.pop %v428
    %v430 = vmul.f32 %v423, 1.442695
    %v431 = vpow.pop %v430
    %v432 = vpack.c.bf16 %v427, %v425
    %v433 = vpack.c.bf16 %v431, %v429
    %v434 = vpack.c.bf16 %v310, %v309
    %v435 = vpack.c.bf16 %v312, %v311
    %v436 = vpack.c.bf16 %v314, %v313
    %v437 = vpack.c.bf16 %v316, %v315
    %v438 = vpack.c.bf16 %v318, %v317
    %v439 = vpack.c.bf16 %v320, %v319
    %v440 = vpack.c.bf16 %v322, %v321
    %v441 = vpack.c.bf16 %v324, %v323
    %450 = vrot.lane.b32.xlu0 %v434, 64
    %v451 = vpop.permute.xlu0 %450
    %452 = vrot.lane.b32.xlu0 %v435, 64
    %v453 = vpop.permute.xlu0 %452
    %454 = vrot.lane.b32.xlu0 %v436, 64
    %v455 = vpop.permute.xlu0 %454
    %456 = vrot.lane.b32.xlu0 %v437, 64
    %v457 = vpop.permute.xlu0 %456
    %458 = vrot.lane.b32.xlu0 %v438, 64
    %v459 = vpop.permute.xlu0 %458
    %460 = vrot.lane.b32.xlu0 %v439, 64
    %v461 = vpop.permute.xlu0 %460
    %462 = vrot.lane.b32.xlu0 %v440, 64
    %v463 = vpop.permute.xlu0 %462
    %464 = vrot.lane.b32.xlu0 %v441, 64
    %v465 = vpop.permute.xlu0 %464
    %474 = vmatpush.bf16.msra.mxu0 %v465
    %475 = vmatpush.bf16.msra.mxu0 %v463
    %476 = vmatpush.bf16.msra.mxu0 %v461
    %477 = vmatpush.bf16.msra.mxu0 %v459
    %478 = vmatpush.bf16.msra.mxu0 %v457
    %479 = vmatpush.bf16.msra.mxu0 %v455
    %480 = vmatpush.bf16.msra.mxu0 %v453
    %481 = vmatpush.bf16.msra.mxu0 %v451
    %482 = vmatmul.bf16.gmra.mxu0 %v432
    %v483 = vpop.f32.mrf.mxu0
    %v484 = vadd.f32 0.0, %v483
    %v485 = vpop.f32.mrf.mxu0
    %v486 = vadd.f32 0.0, %v485
    %487 = vmatmul.bf16.gmra.mxu0 %v433
    %v488 = vpop.f32.mrf.mxu0
    %v489 = vadd.f32 0.0, %v488
    %v490 = vpop.f32.mrf.mxu0
    %v491 = vadd.f32 0.0, %v490
    %492 = vdwg.mxu0
    %v493 = vpack.c.bf16 %v166, %v165
    %v494 = vpack.c.bf16 %v168, %v167
    %v495 = vpack.c.bf16 %v170, %v169
    %v496 = vpack.c.bf16 %v172, %v171
    %v497 = vpack.c.bf16 %v174, %v173
    %v498 = vpack.c.bf16 %v176, %v175
    %v499 = vpack.c.bf16 %v178, %v177
    %v500 = vpack.c.bf16 %v180, %v179
    %501 = vmatpush.bf16.msra.mxu0 %v500
    %502 = vmatpush.bf16.msra.mxu0 %v499
    %503 = vmatpush.bf16.msra.mxu0 %v498
    %504 = vmatpush.bf16.msra.mxu0 %v497
    %505 = vmatpush.bf16.msra.mxu0 %v496
    %506 = vmatpush.bf16.msra.mxu0 %v495
    %507 = vmatpush.bf16.msra.mxu0 %v494
    %508 = vmatpush.bf16.msra.mxu0 %v493
    %509 = vmatmul.bf16.gmra.mxu0 %v432
    %v510 = vpop.f32.mrf.mxu0
    %v511 = vadd.f32 0.0, %v510
    %v512 = vpop.f32.mrf.mxu0
    %v513 = vadd.f32 0.0, %v512
    %514 = vmatmul.bf16.gmra.mxu0 %v433
    %v515 = vpop.f32.mrf.mxu0
    %v516 = vadd.f32 0.0, %v515
    %v517 = vpop.f32.mrf.mxu0
    %v518 = vadd.f32 0.0, %v517
    %519 = vdwg.mxu0
    %v520 = vrcp.pop %v511
    %v521 = vrcp.pop %v513
    %v522 = vrcp.pop %v516
    %v523 = vrcp.pop %v518
    %v524 = vmul.f32 %v484, %v520
    %v525 = vmul.f32 %v486, %v521
    %v526 = vmul.f32 %v489, %v522
    %v527 = vmul.f32 %v491, %v523
    %v528 = vpack.c.bf16 %v525, %v524
    %v529 = vpack.c.bf16 %v527, %v526
    %v530 = vld [vmem:[%s3] sm:$0xf]
    %v531 = vld [vmem:[%s3 + $0x4] sm:$0xf]
    %v532 = vld [vmem:[%s3 + $0x8] sm:$0xf]
    %v533 = vld [vmem:[%s3 + $0xc] sm:$0xf]
    %v538 = vunpack.c.l.b16 %v530
    %v539 = vunpack.c.l.b16 %v531
    %v540 = vunpack.c.l.b16 %v532
    %v541 = vunpack.c.l.b16 %v533
    %v542 = vpack.c.b16 %v539, %v538
    %v543 = vpack.c.b16 %v541, %v540
    %v547 = vsel %vm43, %v528, 0
    %v550 = vsel %vm43, %v529, 0
    %552 = vmatpush.bf16.msra.mxu0 0
    %553 = vmatpush.bf16.msra.mxu0 0
    %554 = vmatpush.bf16.msra.mxu0 0
    %555 = vmatpush.bf16.msra.mxu0 0
    %556 = vmatpush.bf16.msra.mxu0 0
    %557 = vmatpush.bf16.msra.mxu0 0
    %558 = vmatpush.bf16.msra.mxu0 %v543
    %559 = vmatpush.bf16.msra.mxu0 %v542
    %560 = vmatmul.bf16.gmra.mxu0 %v547
    %v561 = vpop.f32.mrf.mxu0
    %v562 = vadd.f32 %v34, %v561
    %v563 = vpop.f32.mrf.mxu0
    %v564 = vadd.f32 %v35, %v563
    %565 = vmatmul.bf16.gmra.mxu0 %v550
    %v566 = vpop.f32.mrf.mxu0
    %v567 = vadd.f32 %v36, %v566
    %v568 = vpop.f32.mrf.mxu0
    %v569 = vadd.f32 %v37, %v568
    %570 = vdwg.mxu0
    %v571 = vld [vmem:[%s4] sm:$0x1]
    %v572 = vmul.f32 %v562, %v562
    %v573 = vmul.f32 %v564, %v564
    %v574 = vmul.f32 %v567, %v567
    %v575 = vmul.f32 %v569, %v569
    %v576 = vsel %vm43, %v572, 0.0
    %577 = vadd.xlane.f32.xlu0 %v576
    %v578 = vpop.xlane.xlu0 %577
    %v579 = vsel %vm43, %v573, 0.0
    %580 = vadd.xlane.f32.xlu0 %v579
    %v581 = vpop.xlane.xlu0 %580
    %v582 = vsel %vm43, %v574, 0.0
    %583 = vadd.xlane.f32.xlu0 %v582
    %v584 = vpop.xlane.xlu0 %583
    %v585 = vsel %vm43, %v575, 0.0
    %586 = vadd.xlane.f32.xlu0 %v585
    %v587 = vpop.xlane.xlu0 %586
    %v588 = vmul.f32 %v578, %v62
    %v589 = vmul.f32 %v581, %v62
    %v590 = vmul.f32 %v584, %v62
    %v591 = vmul.f32 %v587, %v62
    %v592 = vadd.f32 %v588, 1e-06
    %v593 = vadd.f32 %v589, 1e-06
    %v594 = vadd.f32 %v590, 1e-06
    %v595 = vadd.f32 %v591, 1e-06
    %v596 = vrsqrt.pop %v592
    %v597 = vmul.f32 %v596, %v592
    %v598 = vmul.f32 %v597, %v596
    %v599 = vmul.f32 0.5, %v598
    %v600 = vsub.f32 1.5, %v599
    %v601 = vmul.f32 %v596, %v600
    %vm602 = vweird.f32 %v592
    %vm603 = vweird.f32 %v596
    %vm604 = vmor %vm602, %vm603
    %v605 = vsel %vm604, %v596, %v601
    %v606 = vrsqrt.pop %v593
    %v607 = vmul.f32 %v606, %v593
    %v608 = vmul.f32 %v607, %v606
    %v609 = vmul.f32 0.5, %v608
    %v610 = vsub.f32 1.5, %v609
    %v611 = vmul.f32 %v606, %v610
    %vm612 = vweird.f32 %v593
    %vm613 = vweird.f32 %v606
    %vm614 = vmor %vm612, %vm613
    %v615 = vsel %vm614, %v606, %v611
    %v616 = vrsqrt.pop %v594
    %v617 = vmul.f32 %v616, %v594
    %v618 = vmul.f32 %v617, %v616
    %v619 = vmul.f32 0.5, %v618
    %v620 = vsub.f32 1.5, %v619
    %v621 = vmul.f32 %v616, %v620
    %vm622 = vweird.f32 %v594
    %vm623 = vweird.f32 %v616
    %vm624 = vmor %vm622, %vm623
    %v625 = vsel %vm624, %v616, %v621
    %v626 = vrsqrt.pop %v595
    %v627 = vmul.f32 %v626, %v595
    %v628 = vmul.f32 %v627, %v626
    %v629 = vmul.f32 0.5, %v628
    %v630 = vsub.f32 1.5, %v629
    %v631 = vmul.f32 %v626, %v630
    %vm632 = vweird.f32 %v595
    %vm633 = vweird.f32 %v626
    %vm634 = vmor %vm632, %vm633
    %v635 = vsel %vm634, %v626, %v631
    %v636 = vmul.f32 %v562, %v605
    %v637 = vmul.f32 %v564, %v615
    %v638 = vmul.f32 %v567, %v625
    %v639 = vmul.f32 %v569, %v635
    %v641 = vperm.slane %v571, 0
    %v643 = vmul.f32 %v636, %v641
    %v644 = vmul.f32 %v637, %v641
    %v645 = vmul.f32 %v638, %v641
    %v646 = vmul.f32 %v639, %v641
    %v647 = vpack.c.bf16 %v644, %v643
    %v648 = vpack.c.bf16 %v646, %v645
    %v649 = vld [vmem:[%s5] sm:$0xf]
    %v650 = vld [vmem:[%s5 + $0x4] sm:$0xf]
    %v651 = vld [vmem:[%s5 + $0x8] sm:$0xf]
    %v652 = vld [vmem:[%s5 + $0xc] sm:$0xf]
    %v657 = vunpack.c.l.b16 %v649
    %v658 = vunpack.c.l.b16 %v650
    %v659 = vunpack.c.l.b16 %v651
    %v660 = vunpack.c.l.b16 %v652
    %v661 = vpack.c.b16 %v658, %v657
    %v662 = vpack.c.b16 %v660, %v659
    %v666 = vsel %vm43, %v647, 0
    %v669 = vsel %vm43, %v648, 0
    %671 = vmatpush.bf16.msra.mxu0 0
    %672 = vmatpush.bf16.msra.mxu0 0
    %673 = vmatpush.bf16.msra.mxu0 0
    %674 = vmatpush.bf16.msra.mxu0 0
    %675 = vmatpush.bf16.msra.mxu0 0
    %676 = vmatpush.bf16.msra.mxu0 0
    %677 = vmatpush.bf16.msra.mxu0 %v662
    %678 = vmatpush.bf16.msra.mxu0 %v661
    %679 = vmatmul.bf16.gmra.mxu0 %v666
    %v680 = vpop.f32.mrf.mxu0
    %v681 = vadd.f32 0.0, %v680
    %v682 = vpop.f32.mrf.mxu0
    %v683 = vadd.f32 0.0, %v682
    %684 = vmatmul.bf16.gmra.mxu0 %v669
    %v685 = vpop.f32.mrf.mxu0
    %v686 = vadd.f32 0.0, %v685
    %v687 = vpop.f32.mrf.mxu0
    %v688 = vadd.f32 0.0, %v687
    %689 = vdwg.mxu0
    %v690 = vxor.u32 %v681, 2147483648
    %v691 = vxor.u32 %v683, 2147483648
    %v692 = vxor.u32 %v686, 2147483648
    %v693 = vxor.u32 %v688, 2147483648
    %v694 = vmul.f32 %v690, 1.442695
    %v695 = vpow.pop %v694
    %v696 = vmul.f32 %v691, 1.442695
    %v697 = vpow.pop %v696
    %v698 = vmul.f32 %v692, 1.442695
    %v699 = vpow.pop %v698
    %v700 = vmul.f32 %v693, 1.442695
    %v701 = vpow.pop %v700
    %v702 = vadd.f32 %v695, 1.0
    %v703 = vadd.f32 %v697, 1.0
    %v704 = vadd.f32 %v699, 1.0
    %v705 = vadd.f32 %v701, 1.0
    %v706 = vrcp.pop %v702
    %v707 = vmul.f32 %v702, %v706
    %v708 = vsub.f32 1.0, %v707
    %v709 = vmul.f32 %v706, %v708
    %v710 = vadd.f32 %v706, %v709
    %vm711 = vweird.f32 %v702
    %vm712 = vweird.f32 %v706
    %vm713 = vmor %vm711, %vm712
    %v714 = vsel %vm713, %v706, %v710
    %v715 = vand.u32 2147483647, %v702
    %vm716 = vcmp.eq.f32.partialorder %v715, 8.507059e+37
    %v717 = vand.u32 %v702, 2147483648
    %v718 = vor.u32 1.1754944e-38, %v717
    %v719 = vsel %vm716, %v718, %v714
    %v720 = vmul.f32 1.0, %v719
    %v721 = vrcp.pop %v703
    %v722 = vmul.f32 %v703, %v721
    %v723 = vsub.f32 1.0, %v722
    %v724 = vmul.f32 %v721, %v723
    %v725 = vadd.f32 %v721, %v724
    %vm726 = vweird.f32 %v703
    %vm727 = vweird.f32 %v721
    %vm728 = vmor %vm726, %vm727
    %v729 = vsel %vm728, %v721, %v725
    %v730 = vand.u32 2147483647, %v703
    %vm731 = vcmp.eq.f32.partialorder %v730, 8.507059e+37
    %v732 = vand.u32 %v703, 2147483648
    %v733 = vor.u32 1.1754944e-38, %v732
    %v734 = vsel %vm731, %v733, %v729
    %v735 = vmul.f32 1.0, %v734
    %v736 = vrcp.pop %v704
    %v737 = vmul.f32 %v704, %v736
    %v738 = vsub.f32 1.0, %v737
    %v739 = vmul.f32 %v736, %v738
    %v740 = vadd.f32 %v736, %v739
    %vm741 = vweird.f32 %v704
    %vm742 = vweird.f32 %v736
    %vm743 = vmor %vm741, %vm742
    %v744 = vsel %vm743, %v736, %v740
    %v745 = vand.u32 2147483647, %v704
    %vm746 = vcmp.eq.f32.partialorder %v745, 8.507059e+37
    %v747 = vand.u32 %v704, 2147483648
    %v748 = vor.u32 1.1754944e-38, %v747
    %v749 = vsel %vm746, %v748, %v744
    %v750 = vmul.f32 1.0, %v749
    %v751 = vrcp.pop %v705
    %v752 = vmul.f32 %v705, %v751
    %v753 = vsub.f32 1.0, %v752
    %v754 = vmul.f32 %v751, %v753
    %v755 = vadd.f32 %v751, %v754
    %vm756 = vweird.f32 %v705
    %vm757 = vweird.f32 %v751
    %vm758 = vmor %vm756, %vm757
    %v759 = vsel %vm758, %v751, %v755
    %v760 = vand.u32 2147483647, %v705
    %vm761 = vcmp.eq.f32.partialorder %v760, 8.507059e+37
    %v762 = vand.u32 %v705, 2147483648
    %v763 = vor.u32 1.1754944e-38, %v762
    %v764 = vsel %vm761, %v763, %v759
    %v765 = vmul.f32 1.0, %v764
    %v766 = vmul.f32 %v681, %v720
    %v767 = vmul.f32 %v683, %v735
    %v768 = vmul.f32 %v686, %v750
    %v769 = vmul.f32 %v688, %v765
    %774 = vrot.lane.b32.xlu0 %v681, 64
    %v775 = vpop.permute.xlu0 %774
    %776 = vrot.lane.b32.xlu0 %v683, 64
    %v777 = vpop.permute.xlu0 %776
    %778 = vrot.lane.b32.xlu0 %v686, 64
    %v779 = vpop.permute.xlu0 %778
    %780 = vrot.lane.b32.xlu0 %v688, 64
    %v781 = vpop.permute.xlu0 %780
    %v786 = vmul.f32 %v766, %v775
    %v787 = vmul.f32 %v767, %v777
    %v788 = vmul.f32 %v768, %v779
    %v789 = vmul.f32 %v769, %v781
    %v790 = vpack.c.bf16 %v787, %v786
    %v791 = vpack.c.bf16 %v789, %v788
    %v792 = vld [vmem:[%s6] sm:$0xf]
    %v793 = vld [vmem:[%s6 + $0x4] sm:$0xf]
    %v794 = vld [vmem:[%s6 + $0x8] sm:$0xf]
    %v795 = vld [vmem:[%s6 + $0xc] sm:$0xf]
    %v796 = vld [vmem:[%s6 + $0x10] sm:$0xf]
    %v797 = vld [vmem:[%s6 + $0x14] sm:$0xf]
    %v798 = vld [vmem:[%s6 + $0x18] sm:$0xf]
    %v799 = vld [vmem:[%s6 + $0x1c] sm:$0xf]
    %v808 = vunpack.c.l.b16 %v792
    %v809 = vunpack.c.l.b16 %v793
    %v810 = vunpack.c.l.b16 %v794
    %v811 = vunpack.c.l.b16 %v795
    %v812 = vunpack.c.l.b16 %v796
    %v813 = vunpack.c.l.b16 %v797
    %v814 = vunpack.c.l.b16 %v798
    %v815 = vunpack.c.l.b16 %v799
    %v816 = vpack.c.b16 %v809, %v808
    %v817 = vpack.c.b16 %v811, %v810
    %v818 = vpack.c.b16 %v813, %v812
    %v819 = vpack.c.b16 %v815, %v814
    %vm824 = vcmask 523264
    %v826 = vsel %vm824, %v790, 0
    %v829 = vsel %vm824, %v791, 0
    %831 = vmatpush.bf16.msra.mxu0 0
    %832 = vmatpush.bf16.msra.mxu0 0
    %833 = vmatpush.bf16.msra.mxu0 0
    %834 = vmatpush.bf16.msra.mxu0 0
    %835 = vmatpush.bf16.msra.mxu0 %v819
    %836 = vmatpush.bf16.msra.mxu0 %v818
    %837 = vmatpush.bf16.msra.mxu0 %v817
    %838 = vmatpush.bf16.msra.mxu0 %v816
    %839 = vmatmul.bf16.gmra.mxu0 %v826
    %v840 = vpop.f32.mrf.mxu0
    %v841 = vadd.f32 0.0, %v840
    %v842 = vpop.f32.mrf.mxu0
    %v843 = vadd.f32 0.0, %v842
    %844 = vmatmul.bf16.gmra.mxu0 %v829
    %v845 = vpop.f32.mrf.mxu0
    %v846 = vadd.f32 0.0, %v845
    %v847 = vpop.f32.mrf.mxu0
    %v848 = vadd.f32 0.0, %v847
    %849 = vdwg.mxu0
    %v850 = vadd.f32 %v562, %v841
    %v851 = vadd.f32 %v564, %v843
    %v852 = vadd.f32 %v567, %v846
    %v853 = vadd.f32 %v569, %v848
    %854 = vst.msk [vmem:[#allocation2] sm:$0xff] %vm43, %v850
    %855 = vst.msk [vmem:[#allocation2 + $0x8] sm:$0xff] %vm43, %v851
    %856 = vst.msk [vmem:[#allocation2 + $0x10] sm:$0xff] %vm43, %v852
    %857 = vst.msk [vmem:[#allocation2 + $0x18] sm:$0xff] %vm43, %v853
    // Predicated region
    $region38: #{tpu_custom_call.1} parent=1 // pred_check
      _
    $region39: #{tpu_custom_call.1} parent=1 // pred_check_branch
      %859 = sbr.rel (0) target = $region41
    $region40: #{tpu_custom_call.1} parent=1 // pred_region
      %861 = vsyncadd [#allocation3], 0
      %s862 = sshll.u32 [#allocation2], 4
      %s863 = int_to_ptr.vmem [resolvable:$true] %s862
      %s864 = sshll.u32 %s9, 4
      %s865 = int_to_ptr.hbm [resolvable:$true] %s864
      %870 = dma.vmem_to_hbm [thread:$0]  %s863, 512, %s865, [#allocation3], 128, 128, 8
    $region41: #{tpu_custom_call.1} parent=1 // pred_fallthru
      _
    // Predicated region
    $region42: #{tpu_custom_call.1} parent=1 // pred_check
      _
    $region43: #{tpu_custom_call.1} parent=1 // pred_check_branch
      %872 = sbr.rel (0) target = $region45
    $region44: #{tpu_custom_call.1} parent=1 // pred_region
      %874 = dma.done [#allocation3], 512
    $region45: #{tpu_custom_call.1} parent=1 // pred_fallthru
      _
    %875 = vsyncpa [#allocation3], 1

</llo_original>
